<compile_context>
chip_gen: v7x
topology: tpu7x:2x2x1
jax: 0.10.0
libtpu: 0.0.40
codegen_flags: <defaults>
</compile_context>

<pallas_src>
import jax
import jax.numpy as jnp
from jax.experimental import pallas as pl
from jax.experimental.pallas import tpu as pltpu

_BN_EPS = 1e-5
_SUBLANE = 8


def _round_up(x, m):
    return (x + m - 1) // m * m


# ----------------------------------------------------------------------------
# Fused Pallas kernel (whole network; one batch *tile* per grid step)
# ----------------------------------------------------------------------------
def _make_fused_kernel(plan, L):
    """Builds the fused ResNet1D kernel for a static layer plan.

    plan entries are (row_offset, cout, width) Python-int triples into the
    weight/shift slabs; `width` is 3*cin for conv3 entries and cin for 1x1s.
    Refs: x_ref (Cin_pad, Bblk*L), w_ref (rows, maxW), s_ref (rows, 1),
          o_ref (Cout_pad, Bblk*L).
    """

    def kernel(x_ref, w_ref, s_ref, o_ref):
        N = x_ref.shape[1]                       # Bblk * L packed lanes
        lane = jax.lax.broadcasted_iota(jnp.int32, (1, N), 1)
        pos = lane % L                           # position within one element
        not_first = pos != 0
        not_last = pos != (L - 1)

        def conv3(x, off, relu):
            """3-tap conv (stride 1, 'same' pad) + folded-BN shift + opt ReLU.

            x: (Cin, N) f32. Weight rows [off : off+cout], columns ordered
            [tap -1 | tap 0 | tap +1] x Cin with BN scale folded in. Rolls are
            masked with lane%L tests so taps never cross batch boundaries.
            """
            ro, cout, width = off
            x_m1 = jnp.where(not_first, pltpu.roll(x, shift=1, axis=1), 0.0)
            x_p1 = jnp.where(not_last, pltpu.roll(x, shift=N - 1, axis=1), 0.0)
            w = w_ref[ro:ro + cout, :width]      # static, tile-aligned slice
            im2col = jnp.concatenate([x_m1, x, x_p1], axis=0)
            y = jnp.dot(w, im2col, preferred_element_type=jnp.float32)
            y = y + s_ref[ro:ro + cout, :]
            return jnp.maximum(y, 0.0) if relu else y

        def conv1(x, off, add_shift):
            ro, cout, width = off
            w = w_ref[ro:ro + cout, :width]
            y = jnp.dot(w, x, preferred_element_type=jnp.float32)
            if add_shift:
                y = y + s_ref[ro:ro + cout, :]
            return y

        # ---- stem: conv3 -> bn -> relu ----
        h = conv3(x_ref[...].astype(jnp.float32), plan["stem"], relu=True)

        # ---- BasicBlock layers ----
        for blk in plan["blocks"]:
            t = conv3(h, blk["w1"], relu=True)
            # TODO(synk): dropout omitted (nn.Dropout is identity in eval mode).
            t = conv3(t, blk["w2"], relu=False)
            sc = conv1(h, blk["ws"], add_shift=True) if blk["ws"] is not None else h
            h = jnp.maximum(t + sc, 0.0)

        # ---- head: 1x1 conv, no BN / bias (rows padded to 8 for full-tile store)
        o_ref[...] = conv1(h, plan["head"], add_shift=False).astype(o_ref.dtype)

    return kernel


# ----------------------------------------------------------------------------
# Host-side parameter packing (BN folded; all weights merged into 2 slabs)
# ----------------------------------------------------------------------------
def _fold_bn(bn):
    gamma, beta, mean, var = bn
    scale = gamma / jnp.sqrt(var + _BN_EPS)
    shift = beta - mean * scale
    return scale, shift


def _pack_conv3(w, scale):
    """(Cout, Cin, 3) conv weight -> (Cout, 3*Cin), BN scale folded in.

    Columns ordered [tap -1 | tap 0 | tap +1] x Cin to match the kernel's
    im2col = concat([x_m1, x, x_p1]).
    """
    cout, cin, k = w.shape
    assert k == 3, "tap packing assumes kernel_size == 3"
    ws = w * scale[:, None, None]
    return jnp.transpose(ws, (0, 2, 1)).reshape(cout, k * cin).astype(jnp.float32)


def _pack_conv1(w, scale=None):
    """(Cout, Cin, 1) conv weight -> (Cout, Cin), optional BN scale folded in."""
    cout, cin, k = w.shape
    assert k == 1
    w2 = w[:, :, 0]
    if scale is not None:
        w2 = w2 * scale[:, None]
    return w2.astype(jnp.float32)


def _build_slabs_and_plan(params):
    """Returns (w_slab, s_slab, plan, cout_pad, cout).

    w_slab: (rows, maxW) f32  -- all conv weights sublane-stacked, widths
            zero-padded to the max; BN scale folded in.
    s_slab: (rows, 1) f32     -- per-channel folded-BN shifts (0 for the head).
    plan:   static Python structure of (row_off, cout, width) triples.
    """
    entries = []  # list of (w2d, shift_or_None)

    def add(w2d, shift):
        ro = sum(e[0].shape[0] for e in entries)
        entries.append((w2d, shift))
        return (ro, int(w2d.shape[0]), int(w2d.shape[1]))

    # Stem: zero-pad Cin 4 -> 8 (sublane aligned; zero rows are free on MXU).
    scale, shift = _fold_bn(params["bn1"])
    w = params["conv1_w"]
    cin0 = w.shape[1]
    cin_pad = _round_up(cin0, _SUBLANE)
    w = jnp.pad(w, ((0, 0), (0, cin_pad - cin0), (0, 0)))
    stem = add(_pack_conv3(w, scale), shift)

    blocks = []
    for lname in ("layer1", "layer2"):
        for blk in params[lname]:
            s1, b1 = _fold_bn(blk["bn1"])
            s2, b2 = _fold_bn(blk["bn2"])
            d = {"w1": add(_pack_conv3(blk["w1"], s1), b1),
                 "w2": add(_pack_conv3(blk["w2"], s2), b2)}
            if "ws" in blk:
                ss, bs = _fold_bn(blk["bns"])
                d["ws"] = add(_pack_conv1(blk["ws"], ss), bs)
            else:
                d["ws"] = None
            blocks.append(d)

    # Head: zero-pad Cout 6 -> 8 for an unmasked full-sublane output store.
    w = params["conv2_w"]
    cout = w.shape[0]
    cout_pad = _round_up(cout, _SUBLANE)
    w = jnp.pad(w, ((0, cout_pad - cout), (0, 0), (0, 0)))
    head = add(_pack_conv1(w), None)

    max_w = max(e[0].shape[1] for e in entries)
    w_rows, s_rows = [], []
    for w2d, shift in entries:
        c, wd = w2d.shape
        w_rows.append(jnp.pad(w2d, ((0, 0), (0, max_w - wd))))
        s_rows.append(jnp.zeros((c, 1), jnp.float32) if shift is None
                      else shift.reshape(-1, 1).astype(jnp.float32))
    w_slab = jnp.concatenate(w_rows, axis=0)
    s_slab = jnp.concatenate(s_rows, axis=0)

    plan = {"stem": stem, "blocks": blocks, "head": head, "stem_cin": cin_pad}
    return w_slab, s_slab, plan, cout_pad, cout


def _choose_bblk(B, cap=32):
    """Largest divisor of B up to `cap` (Bblk*L ~ 1-4K lanes at L=128)."""
    best = 1
    for d in range(1, min(B, cap) + 1):
        if B % d == 0:
            best = d
    return best


def resnet1d_forward(params, x, block_b=None):
    """x: (B, Cin, L) float32, NCL layout. Returns (B, Cout, L) float32."""
    B, cin, L = x.shape
    w_slab, s_slab, plan, cout_pad, cout = _build_slabs_and_plan(params)
    cin_pad = plan["stem_cin"]

    # Pad input channels to the sublane-aligned stem width and pack the batch
    # into the lane dimension: (B, Cin_pad, L) -> (Cin_pad, B*L).
    if cin < cin_pad:
        x = jnp.pad(x, ((0, 0), (0, cin_pad - cin), (0, 0)))
    xp = jnp.transpose(x, (1, 0, 2)).reshape(cin_pad, B * L)

    bblk = block_b if block_b is not None else _choose_bblk(B)
    assert B % bblk == 0, "batch tile must divide the batch"
    if bblk != B and (bblk * L) % 128 != 0:
        bblk = B  # single grid step: block == full array, no lane constraint
    n_lanes = bblk * L
    grid = (B // bblk,)

    kernel = _make_fused_kernel(plan, L)

    out = pl.pallas_call(
        kernel,
        out_shape=jax.ShapeDtypeStruct((cout_pad, B * L), jnp.float32),
        grid=grid,
        in_specs=[
            # Activations: one batch tile per grid step, lane-dense.
            pl.BlockSpec((cin_pad, n_lanes), lambda i: (0, i)),
            # Weight / shift slabs: constant index_map -> DMA'd once,
            # VMEM-resident across all batch tiles.
            pl.BlockSpec(w_slab.shape, lambda i: (0, 0)),
            pl.BlockSpec(s_slab.shape, lambda i: (0, 0)),
        ],
        out_specs=pl.BlockSpec((cout_pad, n_lanes), lambda i: (0, i)),
        compiler_params=pltpu.CompilerParams(
            dimension_semantics=("parallel",)),   # v7x: batch tiles across TCs
    )(xp, w_slab, s_slab)

    # (Cout_pad, B*L) -> (B, Cout, L), dropping the zero-padded head channels.
    return out.reshape(cout_pad, B, L).transpose(1, 0, 2)[:, :cout, :]


# ----------------------------------------------------------------------------
# Parameter construction (deterministic, in-script)
# ----------------------------------------------------------------------------
def _init_conv(key, cout, cin, k):
    return 0.1 * jax.random.normal(key, (cout, cin, k), dtype=jnp.float32)


def _init_bn(key, c):
    k1, k2, k3, k4 = jax.random.split(key, 4)
    gamma = 1.0 + 0.1 * jax.random.normal(k1, (c,), dtype=jnp.float32)
    beta = 0.1 * jax.random.normal(k2, (c,), dtype=jnp.float32)
    mean = 0.1 * jax.random.normal(k3, (c,), dtype=jnp.float32)
    var = 1.0 + 0.1 * jnp.abs(jax.random.normal(k4, (c,), dtype=jnp.float32))
    return gamma, beta, mean, var


def init_params(key, num_input_channels=4, num_output_channels=6,
                num_blocks=(1, 1)):
    """ResNet1D with BasicBlock (expansion = 1)."""
    keys = iter(jax.random.split(key, 64))
    params = {}
    params["conv1_w"] = _init_conv(next(keys), 8, num_input_channels, 3)
    params["bn1"] = _init_bn(next(keys), 8)

    in_planes = 8
    for li, (planes, nb) in enumerate(zip((8, 16), num_blocks), start=1):
        blocks = []
        for _ in range(nb):
            blk = {
                "w1": _init_conv(next(keys), planes, in_planes, 3),
                "bn1": _init_bn(next(keys), planes),
                "w2": _init_conv(next(keys), planes, planes, 3),
                "bn2": _init_bn(next(keys), planes),
            }
            if in_planes != planes:   # stride is always 1 in this model
                blk["ws"] = _init_conv(next(keys), planes, in_planes, 1)
                blk["bns"] = _init_bn(next(keys), planes)
            blocks.append(blk)
            in_planes = planes
        params[f"layer{li}"] = blocks

    params["conv2_w"] = _init_conv(next(keys), num_output_channels, 16, 1)
    return params


# ----------------------------------------------------------------------------
# Pure-JAX reference (sanity check only)
# ----------------------------------------------------------------------------
def _conv1d_ref(x, w):
    pad = (w.shape[2] - 1) // 2
    return jax.lax.conv_general_dilated(
        x, w, window_strides=(1,), padding=[(pad, pad)],
        dimension_numbers=("NCH", "OIH", "NCH"))


def _ref_forward(params, x):
    def cb(x, w, bn, relu):
        s, b = _fold_bn(bn)
        y = _conv1d_ref(x, w) * s[None, :, None] + b[None, :, None]
        return jnp.maximum(y, 0.0) if relu else y

    out = cb(x, params["conv1_w"], params["bn1"], True)
    for blk in params["layer1"] + params["layer2"]:
        h = cb(out, blk["w1"], blk["bn1"], True)
        sc = cb(out, blk["ws"], blk["bns"], False) if "ws" in blk else out
        out = jnp.maximum(cb(h, blk["w2"], blk["bn2"], False) + sc, 0.0)
    return _conv1d_ref(out, params["conv2_w"])


# ----------------------------------------------------------------------------
if __name__ == "__main__":
    key = jax.random.PRNGKey(0)
    pkey, xkey = jax.random.split(key)

    B, C_IN, L = 2, 4, 128          # NCL, length on the 128-wide lane axis
    params = init_params(pkey, num_input_channels=C_IN, num_output_channels=6,
                         num_blocks=(1, 1))
    x = jax.random.normal(xkey, (B, C_IN, L), dtype=jnp.float32)

    fwd = jax.jit(resnet1d_forward)
    y = jax.block_until_ready(fwd(params, x))
    assert y.shape == (B, 6, L), y.shape

    y_ref = jax.block_until_ready(_ref_forward(params, x))
    assert jnp.allclose(y, y_ref, rtol=1e-3, atol=1e-3), (
        float(jnp.max(jnp.abs(y - y_ref))))

    print("KERNEL_OK")
</pallas_src>

<mosaic_0001>
module attributes {stable_mosaic.version = 11 : i64} {
  func.func @kernel(%arg0: i32, %arg1: memref<8x256xf32, #tpu.memory_space<vmem>>, %arg2: memref<80x48xf32, #tpu.memory_space<vmem>>, %arg3: memref<80x1xf32, #tpu.memory_space<vmem>>, %arg4: memref<8x256xf32, #tpu.memory_space<vmem>>) attributes {dimension_semantics = [#tpu.dimension_semantics<parallel>], iteration_bounds = array<i64: 1>, scalar_prefetch = 0 : i64, scratch_operands = 0 : i64, tpu.core_type = #tpu.core_type<tc>, window_params = [{transform_indices = @transform_0, window_bounds = array<i64: 8, 256>}, {pipeline_mode = #tpu.pipeline_mode<synchronous>, transform_indices = @transform_1, window_bounds = array<i64: 80, 48>}, {pipeline_mode = #tpu.pipeline_mode<synchronous>, transform_indices = @transform_2, window_bounds = array<i64: 80, 1>}, {transform_indices = @transform_3, window_bounds = array<i64: 8, 256>}]} {
    %0 = tpu.iota {dimensions = array<i32: 1>} : vector<1x256xi32>
    %c128_i32 = arith.constant 128 : i32
    %c0_i32 = arith.constant 0 : i32
    %1 = arith.cmpi eq, %c128_i32, %c0_i32 : i32
    %c1_i32 = arith.constant 1 : i32
    %2 = arith.select %1, %c1_i32, %c128_i32 : i32
    %3 = vector.broadcast %2 : i32 to vector<1x256xi32>
    %4 = arith.remsi %0, %3 : vector<1x256xi32>
    %c0_i32_0 = arith.constant 0 : i32
    %5 = vector.broadcast %c0_i32_0 : i32 to vector<1x256xi32>
    %6 = arith.cmpi ne, %4, %5 : vector<1x256xi32>
    %c0_i32_1 = arith.constant 0 : i32
    %7 = vector.broadcast %c0_i32_1 : i32 to vector<1x256xi32>
    %8 = arith.cmpi slt, %4, %7 : vector<1x256xi32>
    %c0_i32_2 = arith.constant 0 : i32
    %9 = arith.cmpi slt, %2, %c0_i32_2 : i32
    %10 = vector.broadcast %9 : i1 to vector<1x256xi1>
    %11 = vector.broadcast %10 : vector<1x256xi1> to vector<1x256xi1>
    %12 = arith.xori %8, %11 : vector<1x256xi1>
    %13 = arith.andi %12, %6 : vector<1x256xi1>
    %14 = vector.broadcast %2 : i32 to vector<1x256xi32>
    %15 = arith.addi %4, %14 : vector<1x256xi32>
    %16 = arith.select %13, %15, %4 : vector<1x256xi1>, vector<1x256xi32>
    %c0_i32_3 = arith.constant 0 : i32
    %17 = vector.broadcast %c0_i32_3 : i32 to vector<1x256xi32>
    %18 = arith.cmpi ne, %16, %17 : vector<1x256xi32>
    %c127_i32 = arith.constant 127 : i32
    %19 = vector.broadcast %c127_i32 : i32 to vector<1x256xi32>
    %20 = arith.cmpi ne, %16, %19 : vector<1x256xi32>
    %c0 = arith.constant 0 : index
    %c0_4 = arith.constant 0 : index
    %21 = vector.load %arg1[%c0, %c0_4] : memref<8x256xf32, #tpu.memory_space<vmem>>, vector<8x256xf32>
    %c1_i32_5 = arith.constant 1 : i32
    %22 = tpu.dynamic_rotate %21 by %c1_i32_5 dim 1 : vector<8x256xf32>, i32 -> vector<8x256xf32>
    %cst = arith.constant 0.000000e+00 : f32
    %23 = vector.shape_cast %18 : vector<1x256xi1> to vector<1x256xi1>
    %24 = vector.broadcast %23 : vector<1x256xi1> to vector<8x256xi1>
    %25 = vector.broadcast %cst : f32 to vector<8x256xf32>
    %26 = arith.select %24, %22, %25 : vector<8x256xi1>, vector<8x256xf32>
    %c255_i32 = arith.constant 255 : i32
    %27 = tpu.dynamic_rotate %21 by %c255_i32 dim 1 : vector<8x256xf32>, i32 -> vector<8x256xf32>
    %cst_6 = arith.constant 0.000000e+00 : f32
    %28 = vector.shape_cast %20 : vector<1x256xi1> to vector<1x256xi1>
    %29 = vector.broadcast %28 : vector<1x256xi1> to vector<8x256xi1>
    %30 = vector.broadcast %cst_6 : f32 to vector<8x256xf32>
    %31 = arith.select %29, %27, %30 : vector<8x256xi1>, vector<8x256xf32>
    %c0_7 = arith.constant 0 : index
    %c0_8 = arith.constant 0 : index
    %32 = vector.load %arg2[%c0_7, %c0_8] : memref<80x48xf32, #tpu.memory_space<vmem>>, vector<8x24xf32>
    %33 = tpu.concatenate %26, %21, %31 in 0 : vector<8x256xf32>, vector<8x256xf32>, vector<8x256xf32> -> vector<24x256xf32>
    %cst_9 = arith.constant dense<0.000000e+00> : vector<8x256xf32>
    %34 = tpu.matmul %32, %33, %cst_9 {dimension_numbers = #tpu.dot_dimension_numbers<[1], [0], [0], [1], [0, 0, 1, 1], [], []>} : vector<8x24xf32>, vector<24x256xf32>, vector<8x256xf32> -> vector<8x256xf32>
    %c0_10 = arith.constant 0 : index
    %c0_11 = arith.constant 0 : index
    %35 = vector.load %arg3[%c0_10, %c0_11] : memref<80x1xf32, #tpu.memory_space<vmem>>, vector<8x1xf32>
    %36 = vector.broadcast %35 : vector<8x1xf32> to vector<8x256xf32>
    %37 = arith.addf %34, %36 : vector<8x256xf32>
    %cst_12 = arith.constant 0.000000e+00 : f32
    %38 = vector.broadcast %cst_12 : f32 to vector<8x256xf32>
    %39 = arith.maximumf %37, %38 : vector<8x256xf32>
    %c1_i32_13 = arith.constant 1 : i32
    %40 = tpu.dynamic_rotate %39 by %c1_i32_13 dim 1 : vector<8x256xf32>, i32 -> vector<8x256xf32>
    %cst_14 = arith.constant 0.000000e+00 : f32
    %41 = vector.shape_cast %18 : vector<1x256xi1> to vector<1x256xi1>
    %42 = vector.broadcast %41 : vector<1x256xi1> to vector<8x256xi1>
    %43 = vector.broadcast %cst_14 : f32 to vector<8x256xf32>
    %44 = arith.select %42, %40, %43 : vector<8x256xi1>, vector<8x256xf32>
    %c255_i32_15 = arith.constant 255 : i32
    %45 = tpu.dynamic_rotate %39 by %c255_i32_15 dim 1 : vector<8x256xf32>, i32 -> vector<8x256xf32>
    %cst_16 = arith.constant 0.000000e+00 : f32
    %46 = vector.shape_cast %20 : vector<1x256xi1> to vector<1x256xi1>
    %47 = vector.broadcast %46 : vector<1x256xi1> to vector<8x256xi1>
    %48 = vector.broadcast %cst_16 : f32 to vector<8x256xf32>
    %49 = arith.select %47, %45, %48 : vector<8x256xi1>, vector<8x256xf32>
    %c8 = arith.constant 8 : index
    %c0_17 = arith.constant 0 : index
    %50 = vector.load %arg2[%c8, %c0_17] : memref<80x48xf32, #tpu.memory_space<vmem>>, vector<8x24xf32>
    %51 = tpu.concatenate %44, %39, %49 in 0 : vector<8x256xf32>, vector<8x256xf32>, vector<8x256xf32> -> vector<24x256xf32>
    %cst_18 = arith.constant dense<0.000000e+00> : vector<8x256xf32>
    %52 = tpu.matmul %50, %51, %cst_18 {dimension_numbers = #tpu.dot_dimension_numbers<[1], [0], [0], [1], [0, 0, 1, 1], [], []>} : vector<8x24xf32>, vector<24x256xf32>, vector<8x256xf32> -> vector<8x256xf32>
    %c8_19 = arith.constant 8 : index
    %c0_20 = arith.constant 0 : index
    %53 = vector.load %arg3[%c8_19, %c0_20] : memref<80x1xf32, #tpu.memory_space<vmem>>, vector<8x1xf32>
    %54 = vector.broadcast %53 : vector<8x1xf32> to vector<8x256xf32>
    %55 = arith.addf %52, %54 : vector<8x256xf32>
    %cst_21 = arith.constant 0.000000e+00 : f32
    %56 = vector.broadcast %cst_21 : f32 to vector<8x256xf32>
    %57 = arith.maximumf %55, %56 : vector<8x256xf32>
    %c1_i32_22 = arith.constant 1 : i32
    %58 = tpu.dynamic_rotate %57 by %c1_i32_22 dim 1 : vector<8x256xf32>, i32 -> vector<8x256xf32>
    %cst_23 = arith.constant 0.000000e+00 : f32
    %59 = vector.shape_cast %18 : vector<1x256xi1> to vector<1x256xi1>
    %60 = vector.broadcast %59 : vector<1x256xi1> to vector<8x256xi1>
    %61 = vector.broadcast %cst_23 : f32 to vector<8x256xf32>
    %62 = arith.select %60, %58, %61 : vector<8x256xi1>, vector<8x256xf32>
    %c255_i32_24 = arith.constant 255 : i32
    %63 = tpu.dynamic_rotate %57 by %c255_i32_24 dim 1 : vector<8x256xf32>, i32 -> vector<8x256xf32>
    %cst_25 = arith.constant 0.000000e+00 : f32
    %64 = vector.shape_cast %20 : vector<1x256xi1> to vector<1x256xi1>
    %65 = vector.broadcast %64 : vector<1x256xi1> to vector<8x256xi1>
    %66 = vector.broadcast %cst_25 : f32 to vector<8x256xf32>
    %67 = arith.select %65, %63, %66 : vector<8x256xi1>, vector<8x256xf32>
    %c16 = arith.constant 16 : index
    %c0_26 = arith.constant 0 : index
    %68 = vector.load %arg2[%c16, %c0_26] : memref<80x48xf32, #tpu.memory_space<vmem>>, vector<8x24xf32>
    %69 = tpu.concatenate %62, %57, %67 in 0 : vector<8x256xf32>, vector<8x256xf32>, vector<8x256xf32> -> vector<24x256xf32>
    %cst_27 = arith.constant dense<0.000000e+00> : vector<8x256xf32>
    %70 = tpu.matmul %68, %69, %cst_27 {dimension_numbers = #tpu.dot_dimension_numbers<[1], [0], [0], [1], [0, 0, 1, 1], [], []>} : vector<8x24xf32>, vector<24x256xf32>, vector<8x256xf32> -> vector<8x256xf32>
    %c16_28 = arith.constant 16 : index
    %c0_29 = arith.constant 0 : index
    %71 = vector.load %arg3[%c16_28, %c0_29] : memref<80x1xf32, #tpu.memory_space<vmem>>, vector<8x1xf32>
    %72 = vector.broadcast %71 : vector<8x1xf32> to vector<8x256xf32>
    %73 = arith.addf %70, %72 : vector<8x256xf32>
    %74 = arith.addf %73, %39 : vector<8x256xf32>
    %cst_30 = arith.constant 0.000000e+00 : f32
    %75 = vector.broadcast %cst_30 : f32 to vector<8x256xf32>
    %76 = arith.maximumf %74, %75 : vector<8x256xf32>
    %c1_i32_31 = arith.constant 1 : i32
    %77 = tpu.dynamic_rotate %76 by %c1_i32_31 dim 1 : vector<8x256xf32>, i32 -> vector<8x256xf32>
    %cst_32 = arith.constant 0.000000e+00 : f32
    %78 = vector.shape_cast %18 : vector<1x256xi1> to vector<1x256xi1>
    %79 = vector.broadcast %78 : vector<1x256xi1> to vector<8x256xi1>
    %80 = vector.broadcast %cst_32 : f32 to vector<8x256xf32>
    %81 = arith.select %79, %77, %80 : vector<8x256xi1>, vector<8x256xf32>
    %c255_i32_33 = arith.constant 255 : i32
    %82 = tpu.dynamic_rotate %76 by %c255_i32_33 dim 1 : vector<8x256xf32>, i32 -> vector<8x256xf32>
    %cst_34 = arith.constant 0.000000e+00 : f32
    %83 = vector.shape_cast %20 : vector<1x256xi1> to vector<1x256xi1>
    %84 = vector.broadcast %83 : vector<1x256xi1> to vector<8x256xi1>
    %85 = vector.broadcast %cst_34 : f32 to vector<8x256xf32>
    %86 = arith.select %84, %82, %85 : vector<8x256xi1>, vector<8x256xf32>
    %c24 = arith.constant 24 : index
    %c0_35 = arith.constant 0 : index
    %87 = vector.load %arg2[%c24, %c0_35] : memref<80x48xf32, #tpu.memory_space<vmem>>, vector<16x24xf32>
    %88 = tpu.concatenate %81, %76, %86 in 0 : vector<8x256xf32>, vector<8x256xf32>, vector<8x256xf32> -> vector<24x256xf32>
    %cst_36 = arith.constant dense<0.000000e+00> : vector<16x256xf32>
    %89 = tpu.matmul %87, %88, %cst_36 {dimension_numbers = #tpu.dot_dimension_numbers<[1], [0], [0], [1], [0, 0, 1, 1], [], []>} : vector<16x24xf32>, vector<24x256xf32>, vector<16x256xf32> -> vector<16x256xf32>
    %c24_37 = arith.constant 24 : index
    %c0_38 = arith.constant 0 : index
    %90 = vector.load %arg3[%c24_37, %c0_38] : memref<80x1xf32, #tpu.memory_space<vmem>>, vector<16x1xf32>
    %91 = vector.broadcast %90 : vector<16x1xf32> to vector<16x256xf32>
    %92 = arith.addf %89, %91 : vector<16x256xf32>
    %cst_39 = arith.constant 0.000000e+00 : f32
    %93 = vector.broadcast %cst_39 : f32 to vector<16x256xf32>
    %94 = arith.maximumf %92, %93 : vector<16x256xf32>
    %c1_i32_40 = arith.constant 1 : i32
    %95 = tpu.dynamic_rotate %94 by %c1_i32_40 dim 1 : vector<16x256xf32>, i32 -> vector<16x256xf32>
    %cst_41 = arith.constant 0.000000e+00 : f32
    %96 = vector.shape_cast %18 : vector<1x256xi1> to vector<1x256xi1>
    %97 = vector.broadcast %96 : vector<1x256xi1> to vector<16x256xi1>
    %98 = vector.broadcast %cst_41 : f32 to vector<16x256xf32>
    %99 = arith.select %97, %95, %98 : vector<16x256xi1>, vector<16x256xf32>
    %c255_i32_42 = arith.constant 255 : i32
    %100 = tpu.dynamic_rotate %94 by %c255_i32_42 dim 1 : vector<16x256xf32>, i32 -> vector<16x256xf32>
    %cst_43 = arith.constant 0.000000e+00 : f32
    %101 = vector.shape_cast %20 : vector<1x256xi1> to vector<1x256xi1>
    %102 = vector.broadcast %101 : vector<1x256xi1> to vector<16x256xi1>
    %103 = vector.broadcast %cst_43 : f32 to vector<16x256xf32>
    %104 = arith.select %102, %100, %103 : vector<16x256xi1>, vector<16x256xf32>
    %c40 = arith.constant 40 : index
    %c0_44 = arith.constant 0 : index
    %105 = vector.load %arg2[%c40, %c0_44] : memref<80x48xf32, #tpu.memory_space<vmem>>, vector<16x48xf32>
    %106 = tpu.concatenate %99, %94, %104 in 0 : vector<16x256xf32>, vector<16x256xf32>, vector<16x256xf32> -> vector<48x256xf32>
    %cst_45 = arith.constant dense<0.000000e+00> : vector<16x256xf32>
    %107 = tpu.matmul %105, %106, %cst_45 {dimension_numbers = #tpu.dot_dimension_numbers<[1], [0], [0], [1], [0, 0, 1, 1], [], []>} : vector<16x48xf32>, vector<48x256xf32>, vector<16x256xf32> -> vector<16x256xf32>
    %c40_46 = arith.constant 40 : index
    %c0_47 = arith.constant 0 : index
    %108 = vector.load %arg3[%c40_46, %c0_47] : memref<80x1xf32, #tpu.memory_space<vmem>>, vector<16x1xf32>
    %109 = vector.broadcast %108 : vector<16x1xf32> to vector<16x256xf32>
    %110 = arith.addf %107, %109 : vector<16x256xf32>
    %c56 = arith.constant 56 : index
    %c0_48 = arith.constant 0 : index
    %111 = vector.load %arg2[%c56, %c0_48] : memref<80x48xf32, #tpu.memory_space<vmem>>, vector<16x8xf32>
    %cst_49 = arith.constant dense<0.000000e+00> : vector<16x256xf32>
    %112 = tpu.matmul %111, %76, %cst_49 {dimension_numbers = #tpu.dot_dimension_numbers<[1], [0], [0], [1], [0, 0, 1, 1], [], []>} : vector<16x8xf32>, vector<8x256xf32>, vector<16x256xf32> -> vector<16x256xf32>
    %c56_50 = arith.constant 56 : index
    %c0_51 = arith.constant 0 : index
    %113 = vector.load %arg3[%c56_50, %c0_51] : memref<80x1xf32, #tpu.memory_space<vmem>>, vector<16x1xf32>
    %114 = vector.broadcast %113 : vector<16x1xf32> to vector<16x256xf32>
    %115 = arith.addf %112, %114 : vector<16x256xf32>
    %116 = arith.addf %110, %115 : vector<16x256xf32>
    %cst_52 = arith.constant 0.000000e+00 : f32
    %117 = vector.broadcast %cst_52 : f32 to vector<16x256xf32>
    %118 = arith.maximumf %116, %117 : vector<16x256xf32>
    %c72 = arith.constant 72 : index
    %c0_53 = arith.constant 0 : index
    %119 = vector.load %arg2[%c72, %c0_53] : memref<80x48xf32, #tpu.memory_space<vmem>>, vector<8x16xf32>
    %cst_54 = arith.constant dense<0.000000e+00> : vector<8x256xf32>
    %120 = tpu.matmul %119, %118, %cst_54 {dimension_numbers = #tpu.dot_dimension_numbers<[1], [0], [0], [1], [0, 0, 1, 1], [], []>} : vector<8x16xf32>, vector<16x256xf32>, vector<8x256xf32> -> vector<8x256xf32>
    %c0_55 = arith.constant 0 : index
    %c0_56 = arith.constant 0 : index
    %121 = vector.load %arg4[%c0_55, %c0_56] : memref<8x256xf32, #tpu.memory_space<vmem>>, vector<8x256xf32>
    tpu.vector_store %arg4[%c0_55, %c0_56], %120 {strides = array<i32>} : memref<8x256xf32, #tpu.memory_space<vmem>>, vector<8x256xf32>,
    return
  }
  func.func @transform_0(%arg0: i32) -> (i32, i32) {
    %c0_i32 = arith.constant 0 : i32
    %c0_i32_0 = arith.constant 0 : i32
    return %c0_i32, %arg0 : i32, i32
  }
  func.func @transform_1(%arg0: i32) -> (i32, i32) {
    %c0_i32 = arith.constant 0 : i32
    %c0_i32_0 = arith.constant 0 : i32
    %c0_i32_1 = arith.constant 0 : i32
    return %c0_i32, %c0_i32_0 : i32, i32
  }
  func.func @transform_2(%arg0: i32) -> (i32, i32) {
    %c0_i32 = arith.constant 0 : i32
    %c0_i32_0 = arith.constant 0 : i32
    %c0_i32_1 = arith.constant 0 : i32
    return %c0_i32, %c0_i32_0 : i32, i32
  }
  func.func @transform_3(%arg0: i32) -> (i32, i32) {
    %c0_i32 = arith.constant 0 : i32
    %c0_i32_0 = arith.constant 0 : i32
    return %c0_i32, %arg0 : i32, i32
  }
}

</mosaic_0001>

<llo_original>
// kernel: resnet1d_forward.1
$region0: #{resnet1d_forward.1}
  #allocation0 [shape = 'u32[]', space=smem, size = 0x4, offset = 0x4, fixed_abs, tag = 'smem constant byte address 0x4 - core index']
  #allocation1 [shape = 'u32[144,128]{1,0:T(1,128)}', space=vmem, size = 0x12000, scoped, tag = 'internal scratch']
  %s0 = inlined_call_operand.vmem [shape: f32[8,256], index: 0, kind: input, shape index: {}]
  %s1 = inlined_call_operand.vmem [shape: f32[80,48], index: 1, kind: input, shape index: {}]
  %s2 = inlined_call_operand.vmem [shape: f32[80,1], index: 2, kind: input, shape index: {}]
  %s3 = inlined_call_operand.vmem [shape: f32[8,256], index: 3, kind: output, shape index: {}]
  %s4 = sld [smem:[#allocation0]]
  $region22: #{resnet1d_forward.1} parent=0
    _
  %s6 = ssub.s32 1, %s4
  %s7 = scalar_select 0, %s6, %s4
  // Predicated region
  $region2: #{resnet1d_forward.1} parent=0 // pred_check
    _
  $region3: #{resnet1d_forward.1} parent=0 // pred_check_branch
    %9 = sbr.rel (0) target = $region5
  $region4: #{resnet1d_forward.1} parent=0 // pred_region
    _
  $region5: #{resnet1d_forward.1} parent=0 // pred_fallthru
    _
  // Predicated region
  $region6: #{resnet1d_forward.1} parent=0 // pred_check
    _
  $region7: #{resnet1d_forward.1} parent=0 // pred_check_branch
    %11 = sbr.rel (0) target = $region9
  $region8: #{resnet1d_forward.1} parent=0 // pred_region
    _
  $region9: #{resnet1d_forward.1} parent=0 // pred_fallthru
    _
  // Predicated region
  $region10: #{resnet1d_forward.1} parent=0 // pred_check
    _
  $region11: #{resnet1d_forward.1} parent=0 // pred_check_branch
    %13 = sbr.rel (0) target = $region13
  $region12: #{resnet1d_forward.1} parent=0 // pred_region
    _
  $region13: #{resnet1d_forward.1} parent=0 // pred_fallthru
    _
  %v14 = vlaneseq
  %v15 = vand.u32 %v14, 127
  %v16 = vadd.s32 %v15, 128
  %vm17 = vcmp.lt.s32.totalorder %v15, 0
  %v18 = vsub.s32 0, %v15
  %v19 = vsel %vm17, %v18, %v15
  %v20 = vshrl.u32 %v19, 7
  %v21 = vand.u32 %v19, 127
  %v22 = vsub.s32 0, %v21
  %v23 = vsel %vm17, %v22, %v21
  %vm24 = vcmp.lt.s32.totalorder %v16, 0
  %v25 = vsub.s32 0, %v16
  %v26 = vsel %vm24, %v25, %v16
  %v27 = vshrl.u32 %v26, 7
  %v28 = vand.u32 %v26, 127
  %v29 = vsub.s32 0, %v28
  %v30 = vsel %vm24, %v29, %v28
  %vm31 = vcmp.ne.s32.totalorder %v23, 0
  %vm32 = vcmp.ne.s32.totalorder %v30, 0
  %vm33 = vcmp.lt.s32.totalorder %v23, 0
  %vm34 = vcmp.lt.s32.totalorder %v30, 0
  %vm35 = vmand %vm33, %vm31
  %vm36 = vmand %vm34, %vm32
  %v37 = vadd.s32 %v23, 128
  %v38 = vadd.s32 %v30, 128
  %v39 = vsel %vm35, %v37, %v23
  %v40 = vsel %vm36, %v38, %v30
  %vm41 = vcmp.ne.s32.totalorder %v39, 0
  %vm42 = vcmp.ne.s32.totalorder %v40, 0
  %vm43 = vcmp.ne.s32.totalorder %v39, 127
  %vm44 = vcmp.ne.s32.totalorder %v40, 127
  %v45 = vld [vmem:[%s0] sm:$0xff]
  %v46 = vld [vmem:[%s0 + $0x8] sm:$0xff]
  %47 = vrot.lane.b32.xlu0 %v45, 1
  %v48 = vpop.permute.xlu0 %47
  %49 = vrot.lane.b32.xlu0 %v46, 1
  %v50 = vpop.permute.xlu0 %49
  %vm51 = vcmp.lt.s32.totalorder %v15, 1
  %v52 = vsel %vm51, %v48, %v50
  %v53 = vsel %vm51, %v50, %v48
  %v54 = vsel %vm41, 1, 0
  %v55 = vsel %vm42, 1, 0
  %vm56 = vcmp.eq.s32.totalorder %v54, 1
  %vm57 = vcmp.eq.s32.totalorder %v55, 1
  %v58 = vsel %vm56, %v53, 0.0
  %v59 = vsel %vm57, %v52, 0.0
  %60 = vrot.lane.b32.xlu0 %v45, 127
  %v61 = vpop.permute.xlu0 %60
  %62 = vrot.lane.b32.xlu0 %v46, 127
  %v63 = vpop.permute.xlu0 %62
  %vm64 = vcmp.lt.s32.totalorder %v15, 127
  %v65 = vsel %vm64, %v61, %v63
  %v66 = vsel %vm64, %v63, %v61
  %v67 = vsel %vm43, 1, 0
  %v68 = vsel %vm44, 1, 0
  %vm69 = vcmp.eq.s32.totalorder %v67, 1
  %vm70 = vcmp.eq.s32.totalorder %v68, 1
  %v71 = vsel %vm69, %v65, 0.0
  %v72 = vsel %vm70, %v66, 0.0
  %v73 = vld [vmem:[%s1] sm:$0xff]
  %v74 = vld [vmem:[%s2] sm:$0xff]
  %76 = vset.pattern.permute.xlu0 0
  %77 = vperm.xlu0 %76, %v74
  %v78 = vpop.permute.xlu0 %77
  %vm80 = vcmask 195584
  %v82 = vsel %vm80, %v73, 0
  %84 = vmatprep.subr.mxu0 %v59
  %85 = vmatpush1.msra.mxu0 %v58
  %86 = vmatprep.subr.mxu0 %v46
  %87 = vmatpush1.msra.mxu0 %v45
  %88 = vmatprep.subr.mxu0 %v72
  %89 = vmatpush1.msra.mxu0 %v71
  %90 = vmatprep.subr.mxu0 0.0
  %91 = vmatpush1.msra.mxu0 0.0
  %92 = vmatprep.subr.mxu0 0.0
  %93 = vmatpush1.msra.mxu0 0.0
  %94 = vmatprep.subr.mxu0 0.0
  %95 = vmatpush1.msra.mxu0 0.0
  %96 = vmatprep.subr.mxu0 0.0
  %97 = vmatpush1.msra.mxu0 0.0
  %98 = vmatprep.subr.mxu0 0.0
  %99 = vmatpush1.msra.mxu0 0.0
  %100 = vmatprep.subr.mxu0 0.0
  %101 = vmatpush1.msra.mxu0 0.0
  %102 = vmatprep.subr.mxu0 0.0
  %103 = vmatpush1.msra.mxu0 0.0
  %104 = vmatprep.subr.mxu0 0.0
  %105 = vmatpush1.msra.mxu0 0.0
  %106 = vmatprep.subr.mxu0 0.0
  %107 = vmatpush1.msra.mxu0 0.0
  %108 = vmatprep.subr.mxu0 0.0
  %109 = vmatpush1.msra.mxu0 0.0
  %110 = vmatprep.subr.mxu0 0.0
  %111 = vmatpush1.msra.mxu0 0.0
  %112 = vmatprep.subr.mxu0 0.0
  %113 = vmatpush1.msra.mxu0 0.0
  %114 = vmatprep.subr.mxu0 0.0
  %115 = vmatpush1.msra.mxu0 0.0
  %116 = vmatprep.subr.mxu0 0.0
  %117 = vmatpush1.msra.mxu0 0.0
  %118 = vmatprep.subr.mxu0 0.0
  %119 = vmatpush1.msra.mxu0 0.0
  %120 = vmatprep.subr.mxu0 0.0
  %121 = vmatpush1.msra.mxu0 0.0
  %122 = vmatprep.subr.mxu0 0.0
  %123 = vmatpush1.msra.mxu0 0.0
  %124 = vmatprep.subr.mxu0 0.0
  %125 = vmatpush1.msra.mxu0 0.0
  %126 = vmatprep.subr.mxu0 0.0
  %127 = vmatpush1.msra.mxu0 0.0
  %128 = vmatprep.subr.mxu0 0.0
  %129 = vmatpush1.msra.mxu0 0.0
  %130 = vmatprep.subr.mxu0 0.0
  %131 = vmatpush1.msra.mxu0 0.0
  %132 = vmatprep.subr.mxu0 0.0
  %133 = vmatpush1.msra.mxu0 0.0
  %134 = vmatprep.subr.mxu0 0.0
  %135 = vmatpush1.msra.mxu0 0.0
  %136 = vmatprep.subr.mxu0 0.0
  %137 = vmatpush1.msra.mxu0 0.0
  %138 = vmatprep.subr.mxu0 0.0
  %139 = vmatpush1.msra.mxu0 0.0
  %140 = vmatprep.subr.mxu0 0.0
  %141 = vmatpush1.msra.mxu0 0.0
  %142 = vmatprep.subr.mxu0 0.0
  %143 = vmatpush1.msra.mxu0 0.0
  %144 = vmatprep.subr.mxu0 0.0
  %145 = vmatpush1.msra.mxu0 0.0
  %146 = vmatprep.subr.mxu0 0.0
  %147 = vmatpush1.msra.mxu0 0.0
  %148 = vmatprep.mubr.f32.mxu0 0.0
  %149 = vmatmul.mubr.f32.gmra.mrb[0].mxu0 %v82
  %v150 = vpop.f32.mrb[0].mxu0
  %v151 = vadd.f32 %v78, %v150
  %v152 = vpop.f32.mrb[0].mxu0
  %v153 = vadd.f32 %v78, %v152
  %154 = vdwg.mxu0
  %v155 = vmax.f32 %v151, 0.0
  %v156 = vmax.f32 %v153, 0.0
  %157 = vrot.lane.b32.xlu0 %v155, 1
  %v158 = vpop.permute.xlu0 %157
  %159 = vrot.lane.b32.xlu0 %v156, 1
  %v160 = vpop.permute.xlu0 %159
  %v161 = vsel %vm51, %v158, %v160
  %v162 = vsel %vm51, %v160, %v158
  %v163 = vsel %vm56, %v162, 0.0
  %v164 = vsel %vm57, %v161, 0.0
  %165 = vrot.lane.b32.xlu0 %v155, 127
  %v166 = vpop.permute.xlu0 %165
  %167 = vrot.lane.b32.xlu0 %v156, 127
  %v168 = vpop.permute.xlu0 %167
  %v169 = vsel %vm64, %v166, %v168
  %v170 = vsel %vm64, %v168, %v166
  %v171 = vsel %vm69, %v169, 0.0
  %v172 = vsel %vm70, %v170, 0.0
  %v173 = vld [vmem:[%s1 + $0x8] sm:$0xff]
  %v174 = vld [vmem:[%s2 + $0x8] sm:$0xff]
  %176 = vset.pattern.permute.xlu0 0
  %177 = vperm.xlu0 %176, %v174
  %v178 = vpop.permute.xlu0 %177
  %v181 = vsel %vm80, %v173, 0
  %183 = vmatprep.subr.mxu0 %v164
  %184 = vmatpush1.msra.mxu0 %v163
  %185 = vmatprep.subr.mxu0 %v156
  %186 = vmatpush1.msra.mxu0 %v155
  %187 = vmatprep.subr.mxu0 %v172
  %188 = vmatpush1.msra.mxu0 %v171
  %189 = vmatprep.subr.mxu0 0.0
  %190 = vmatpush1.msra.mxu0 0.0
  %191 = vmatprep.subr.mxu0 0.0
  %192 = vmatpush1.msra.mxu0 0.0
  %193 = vmatprep.subr.mxu0 0.0
  %194 = vmatpush1.msra.mxu0 0.0
  %195 = vmatprep.subr.mxu0 0.0
  %196 = vmatpush1.msra.mxu0 0.0
  %197 = vmatprep.subr.mxu0 0.0
  %198 = vmatpush1.msra.mxu0 0.0
  %199 = vmatprep.subr.mxu0 0.0
  %200 = vmatpush1.msra.mxu0 0.0
  %201 = vmatprep.subr.mxu0 0.0
  %202 = vmatpush1.msra.mxu0 0.0
  %203 = vmatprep.subr.mxu0 0.0
  %204 = vmatpush1.msra.mxu0 0.0
  %205 = vmatprep.subr.mxu0 0.0
  %206 = vmatpush1.msra.mxu0 0.0
  %207 = vmatprep.subr.mxu0 0.0
  %208 = vmatpush1.msra.mxu0 0.0
  %209 = vmatprep.subr.mxu0 0.0
  %210 = vmatpush1.msra.mxu0 0.0
  %211 = vmatprep.subr.mxu0 0.0
  %212 = vmatpush1.msra.mxu0 0.0
  %213 = vmatprep.subr.mxu0 0.0
  %214 = vmatpush1.msra.mxu0 0.0
  %215 = vmatprep.subr.mxu0 0.0
  %216 = vmatpush1.msra.mxu0 0.0
  %217 = vmatprep.subr.mxu0 0.0
  %218 = vmatpush1.msra.mxu0 0.0
  %219 = vmatprep.subr.mxu0 0.0
  %220 = vmatpush1.msra.mxu0 0.0
  %221 = vmatprep.subr.mxu0 0.0
  %222 = vmatpush1.msra.mxu0 0.0
  %223 = vmatprep.subr.mxu0 0.0
  %224 = vmatpush1.msra.mxu0 0.0
  %225 = vmatprep.subr.mxu0 0.0
  %226 = vmatpush1.msra.mxu0 0.0
  %227 = vmatprep.subr.mxu0 0.0
  %228 = vmatpush1.msra.mxu0 0.0
  %229 = vmatprep.subr.mxu0 0.0
  %230 = vmatpush1.msra.mxu0 0.0
  %231 = vmatprep.subr.mxu0 0.0
  %232 = vmatpush1.msra.mxu0 0.0
  %233 = vmatprep.subr.mxu0 0.0
  %234 = vmatpush1.msra.mxu0 0.0
  %235 = vmatprep.subr.mxu0 0.0
  %236 = vmatpush1.msra.mxu0 0.0
  %237 = vmatprep.subr.mxu0 0.0
  %238 = vmatpush1.msra.mxu0 0.0
  %239 = vmatprep.subr.mxu0 0.0
  %240 = vmatpush1.msra.mxu0 0.0
  %241 = vmatprep.subr.mxu0 0.0
  %242 = vmatpush1.msra.mxu0 0.0
  %243 = vmatprep.subr.mxu0 0.0
  %244 = vmatpush1.msra.mxu0 0.0
  %245 = vmatprep.subr.mxu0 0.0
  %246 = vmatpush1.msra.mxu0 0.0
  %247 = vmatprep.mubr.f32.mxu0 0.0
  %248 = vmatmul.mubr.f32.gmra.mrb[0].mxu0 %v181
  %v249 = vpop.f32.mrb[0].mxu0
  %v250 = vadd.f32 %v178, %v249
  %v251 = vpop.f32.mrb[0].mxu0
  %v252 = vadd.f32 %v178, %v251
  %253 = vdwg.mxu0
  %v254 = vmax.f32 %v250, 0.0
  %v255 = vmax.f32 %v252, 0.0
  %256 = vrot.lane.b32.xlu0 %v254, 1
  %v257 = vpop.permute.xlu0 %256
  %258 = vrot.lane.b32.xlu0 %v255, 1
  %v259 = vpop.permute.xlu0 %258
  %v260 = vsel %vm51, %v257, %v259
  %v261 = vsel %vm51, %v259, %v257
  %v262 = vsel %vm56, %v261, 0.0
  %v263 = vsel %vm57, %v260, 0.0
  %264 = vrot.lane.b32.xlu0 %v254, 127
  %v265 = vpop.permute.xlu0 %264
  %266 = vrot.lane.b32.xlu0 %v255, 127
  %v267 = vpop.permute.xlu0 %266
  %v268 = vsel %vm64, %v265, %v267
  %v269 = vsel %vm64, %v267, %v265
  %v270 = vsel %vm69, %v268, 0.0
  %v271 = vsel %vm70, %v269, 0.0
  %v272 = vld [vmem:[%s1 + $0x10] sm:$0xff]
  %v273 = vld [vmem:[%s2 + $0x10] sm:$0xff]
  %275 = vset.pattern.permute.xlu0 0
  %276 = vperm.xlu0 %275, %v273
  %v277 = vpop.permute.xlu0 %276
  %v280 = vsel %vm80, %v272, 0
  %282 = vmatprep.subr.mxu0 %v263
  %283 = vmatpush1.msra.mxu0 %v262
  %284 = vmatprep.subr.mxu0 %v255
  %285 = vmatpush1.msra.mxu0 %v254
  %286 = vmatprep.subr.mxu0 %v271
  %287 = vmatpush1.msra.mxu0 %v270
  %288 = vmatprep.subr.mxu0 0.0
  %289 = vmatpush1.msra.mxu0 0.0
  %290 = vmatprep.subr.mxu0 0.0
  %291 = vmatpush1.msra.mxu0 0.0
  %292 = vmatprep.subr.mxu0 0.0
  %293 = vmatpush1.msra.mxu0 0.0
  %294 = vmatprep.subr.mxu0 0.0
  %295 = vmatpush1.msra.mxu0 0.0
  %296 = vmatprep.subr.mxu0 0.0
  %297 = vmatpush1.msra.mxu0 0.0
  %298 = vmatprep.subr.mxu0 0.0
  %299 = vmatpush1.msra.mxu0 0.0
  %300 = vmatprep.subr.mxu0 0.0
  %301 = vmatpush1.msra.mxu0 0.0
  %302 = vmatprep.subr.mxu0 0.0
  %303 = vmatpush1.msra.mxu0 0.0
  %304 = vmatprep.subr.mxu0 0.0
  %305 = vmatpush1.msra.mxu0 0.0
  %306 = vmatprep.subr.mxu0 0.0
  %307 = vmatpush1.msra.mxu0 0.0
  %308 = vmatprep.subr.mxu0 0.0
  %309 = vmatpush1.msra.mxu0 0.0
  %310 = vmatprep.subr.mxu0 0.0
  %311 = vmatpush1.msra.mxu0 0.0
  %312 = vmatprep.subr.mxu0 0.0
  %313 = vmatpush1.msra.mxu0 0.0
  %314 = vmatprep.subr.mxu0 0.0
  %315 = vmatpush1.msra.mxu0 0.0
  %316 = vmatprep.subr.mxu0 0.0
  %317 = vmatpush1.msra.mxu0 0.0
  %318 = vmatprep.subr.mxu0 0.0
  %319 = vmatpush1.msra.mxu0 0.0
  %320 = vmatprep.subr.mxu0 0.0
  %321 = vmatpush1.msra.mxu0 0.0
  %322 = vmatprep.subr.mxu0 0.0
  %323 = vmatpush1.msra.mxu0 0.0
  %324 = vmatprep.subr.mxu0 0.0
  %325 = vmatpush1.msra.mxu0 0.0
  %326 = vmatprep.subr.mxu0 0.0
  %327 = vmatpush1.msra.mxu0 0.0
  %328 = vmatprep.subr.mxu0 0.0
  %329 = vmatpush1.msra.mxu0 0.0
  %330 = vmatprep.subr.mxu0 0.0
  %331 = vmatpush1.msra.mxu0 0.0
  %332 = vmatprep.subr.mxu0 0.0
  %333 = vmatpush1.msra.mxu0 0.0
  %334 = vmatprep.subr.mxu0 0.0
  %335 = vmatpush1.msra.mxu0 0.0
  %336 = vmatprep.subr.mxu0 0.0
  %337 = vmatpush1.msra.mxu0 0.0
  %338 = vmatprep.subr.mxu0 0.0
  %339 = vmatpush1.msra.mxu0 0.0
  %340 = vmatprep.subr.mxu0 0.0
  %341 = vmatpush1.msra.mxu0 0.0
  %342 = vmatprep.subr.mxu0 0.0
  %343 = vmatpush1.msra.mxu0 0.0
  %344 = vmatprep.subr.mxu0 0.0
  %345 = vmatpush1.msra.mxu0 0.0
  %346 = vmatprep.mubr.f32.mxu0 0.0
  %347 = vmatmul.mubr.f32.gmra.mrb[0].mxu0 %v280
  %v348 = vpop.f32.mrb[0].mxu0
  %v349 = vadd.f32 %v277, %v348
  %v350 = vpop.f32.mrb[0].mxu0
  %v351 = vadd.f32 %v277, %v350
  %352 = vdwg.mxu0
  %v353 = vadd.f32 %v349, %v155
  %v354 = vadd.f32 %v351, %v156
  %v355 = vmax.f32 %v353, 0.0
  %v356 = vmax.f32 %v354, 0.0
  %357 = vrot.lane.b32.xlu0 %v355, 1
  %v358 = vpop.permute.xlu0 %357
  %359 = vrot.lane.b32.xlu0 %v356, 1
  %v360 = vpop.permute.xlu0 %359
  %v361 = vsel %vm51, %v358, %v360
  %v362 = vsel %vm51, %v360, %v358
  %v363 = vsel %vm56, %v362, 0.0
  %v364 = vsel %vm57, %v361, 0.0
  %365 = vrot.lane.b32.xlu0 %v355, 127
  %v366 = vpop.permute.xlu0 %365
  %367 = vrot.lane.b32.xlu0 %v356, 127
  %v368 = vpop.permute.xlu0 %367
  %v369 = vsel %vm64, %v366, %v368
  %v370 = vsel %vm64, %v368, %v366
  %v371 = vsel %vm69, %v369, 0.0
  %v372 = vsel %vm70, %v370, 0.0
  %v373 = vld [vmem:[%s1 + $0x18] sm:$0xff]
  %v374 = vld [vmem:[%s1 + $0x20] sm:$0xff]
  %v375 = vld [vmem:[%s2 + $0x18] sm:$0xff]
  %v376 = vld [vmem:[%s2 + $0x20] sm:$0xff]
  %378 = vset.pattern.permute.xlu0 0
  %379 = vperm.xlu0 %378, %v375
  %v380 = vpop.permute.xlu0 %379
  %383 = vset.pattern.permute.xlu0 0
  %384 = vperm.xlu0 %383, %v376
  %v385 = vpop.permute.xlu0 %384
  %v388 = vsel %vm80, %v373, 0
  %v391 = vsel %vm80, %v374, 0
  %393 = vmatprep.subr.mxu0 %v364
  %394 = vmatpush1.msra.mxu0 %v363
  %395 = vmatprep.subr.mxu0 %v356
  %396 = vmatpush1.msra.mxu0 %v355
  %397 = vmatprep.subr.mxu0 %v372
  %398 = vmatpush1.msra.mxu0 %v371
  %399 = vmatprep.subr.mxu0 0.0
  %400 = vmatpush1.msra.mxu0 0.0
  %401 = vmatprep.subr.mxu0 0.0
  %402 = vmatpush1.msra.mxu0 0.0
  %403 = vmatprep.subr.mxu0 0.0
  %404 = vmatpush1.msra.mxu0 0.0
  %405 = vmatprep.subr.mxu0 0.0
  %406 = vmatpush1.msra.mxu0 0.0
  %407 = vmatprep.subr.mxu0 0.0
  %408 = vmatpush1.msra.mxu0 0.0
  %409 = vmatprep.subr.mxu0 0.0
  %410 = vmatpush1.msra.mxu0 0.0
  %411 = vmatprep.subr.mxu0 0.0
  %412 = vmatpush1.msra.mxu0 0.0
  %413 = vmatprep.subr.mxu0 0.0
  %414 = vmatpush1.msra.mxu0 0.0
  %415 = vmatprep.subr.mxu0 0.0
  %416 = vmatpush1.msra.mxu0 0.0
  %417 = vmatprep.subr.mxu0 0.0
  %418 = vmatpush1.msra.mxu0 0.0
  %419 = vmatprep.subr.mxu0 0.0
  %420 = vmatpush1.msra.mxu0 0.0
  %421 = vmatprep.subr.mxu0 0.0
  %422 = vmatpush1.msra.mxu0 0.0
  %423 = vmatprep.subr.mxu0 0.0
  %424 = vmatpush1.msra.mxu0 0.0
  %425 = vmatprep.subr.mxu0 0.0
  %426 = vmatpush1.msra.mxu0 0.0
  %427 = vmatprep.subr.mxu0 0.0
  %428 = vmatpush1.msra.mxu0 0.0
  %429 = vmatprep.subr.mxu0 0.0
  %430 = vmatpush1.msra.mxu0 0.0
  %431 = vmatprep.subr.mxu0 0.0
  %432 = vmatpush1.msra.mxu0 0.0
  %433 = vmatprep.subr.mxu0 0.0
  %434 = vmatpush1.msra.mxu0 0.0
  %435 = vmatprep.subr.mxu0 0.0
  %436 = vmatpush1.msra.mxu0 0.0
  %437 = vmatprep.subr.mxu0 0.0
  %438 = vmatpush1.msra.mxu0 0.0
  %439 = vmatprep.subr.mxu0 0.0
  %440 = vmatpush1.msra.mxu0 0.0
  %441 = vmatprep.subr.mxu0 0.0
  %442 = vmatpush1.msra.mxu0 0.0
  %443 = vmatprep.subr.mxu0 0.0
  %444 = vmatpush1.msra.mxu0 0.0
  %445 = vmatprep.subr.mxu0 0.0
  %446 = vmatpush1.msra.mxu0 0.0
  %447 = vmatprep.subr.mxu0 0.0
  %448 = vmatpush1.msra.mxu0 0.0
  %449 = vmatprep.subr.mxu0 0.0
  %450 = vmatpush1.msra.mxu0 0.0
  %451 = vmatprep.subr.mxu0 0.0
  %452 = vmatpush1.msra.mxu0 0.0
  %453 = vmatprep.subr.mxu0 0.0
  %454 = vmatpush1.msra.mxu0 0.0
  %455 = vmatprep.subr.mxu0 0.0
  %456 = vmatpush1.msra.mxu0 0.0
  %457 = vmatprep.mubr.f32.mxu0 0.0
  %458 = vmatmul.mubr.f32.gmra.mrb[0].mxu0 %v388
  %v459 = vpop.f32.mrb[0].mxu0
  %v460 = vadd.f32 %v380, %v459
  %v461 = vpop.f32.mrb[0].mxu0
  %v462 = vadd.f32 %v380, %v461
  %463 = vmatprep.mubr.f32.mxu0 0.0
  %464 = vmatmul.mubr.f32.gmra.mrb[0].mxu0 %v391
  %v465 = vpop.f32.mrb[0].mxu0
  %v466 = vadd.f32 %v385, %v465
  %v467 = vpop.f32.mrb[0].mxu0
  %v468 = vadd.f32 %v385, %v467
  %469 = vdwg.mxu0
  %v470 = vmax.f32 %v460, 0.0
  %v471 = vmax.f32 %v462, 0.0
  %v472 = vmax.f32 %v466, 0.0
  %v473 = vmax.f32 %v468, 0.0
  %474 = vrot.lane.b32.xlu0 %v470, 1
  %v475 = vpop.permute.xlu0 %474
  %476 = vrot.lane.b32.xlu0 %v472, 1
  %v477 = vpop.permute.xlu0 %476
  %478 = vrot.lane.b32.xlu0 %v471, 1
  %v479 = vpop.permute.xlu0 %478
  %480 = vrot.lane.b32.xlu0 %v473, 1
  %v481 = vpop.permute.xlu0 %480
  %v482 = vsel %vm51, %v475, %v479
  %v483 = vsel %vm51, %v477, %v481
  %v484 = vsel %vm51, %v479, %v475
  %v485 = vsel %vm51, %v481, %v477
  %v486 = vsel %vm56, %v484, 0.0
  %v487 = vsel %vm57, %v482, 0.0
  %v488 = vsel %vm56, %v485, 0.0
  %v489 = vsel %vm57, %v483, 0.0
  %490 = vrot.lane.b32.xlu0 %v470, 127
  %v491 = vpop.permute.xlu0 %490
  %492 = vrot.lane.b32.xlu0 %v472, 127
  %v493 = vpop.permute.xlu0 %492
  %494 = vrot.lane.b32.xlu0 %v471, 127
  %v495 = vpop.permute.xlu0 %494
  %496 = vrot.lane.b32.xlu0 %v473, 127
  %v497 = vpop.permute.xlu0 %496
  %v498 = vsel %vm64, %v491, %v495
  %v499 = vsel %vm64, %v493, %v497
  %v500 = vsel %vm64, %v495, %v491
  %v501 = vsel %vm64, %v497, %v493
  %v502 = vsel %vm69, %v498, 0.0
  %v503 = vsel %vm70, %v500, 0.0
  %v504 = vsel %vm69, %v499, 0.0
  %v505 = vsel %vm70, %v501, 0.0
  %v506 = vld [vmem:[%s1 + $0x28] sm:$0xff]
  %v507 = vld [vmem:[%s1 + $0x30] sm:$0xff]
  %v508 = vld [vmem:[%s2 + $0x28] sm:$0xff]
  %v509 = vld [vmem:[%s2 + $0x30] sm:$0xff]
  %511 = vset.pattern.permute.xlu0 0
  %512 = vperm.xlu0 %511, %v508
  %v513 = vpop.permute.xlu0 %512
  %516 = vset.pattern.permute.xlu0 0
  %517 = vperm.xlu0 %516, %v509
  %v518 = vpop.permute.xlu0 %517
  %vm520 = vcmask 392192
  %v522 = vsel %vm520, %v506, 0
  %v525 = vsel %vm520, %v507, 0
  %527 = vmatprep.subr.mxu0 %v487
  %528 = vmatpush1.msra.mxu0 %v486
  %529 = vmatprep.subr.mxu0 %v489
  %530 = vmatpush1.msra.mxu0 %v488
  %531 = vmatprep.subr.mxu0 %v471
  %532 = vmatpush1.msra.mxu0 %v470
  %533 = vmatprep.subr.mxu0 %v473
  %534 = vmatpush1.msra.mxu0 %v472
  %535 = vmatprep.subr.mxu0 %v503
  %536 = vmatpush1.msra.mxu0 %v502
  %537 = vmatprep.subr.mxu0 %v505
  %538 = vmatpush1.msra.mxu0 %v504
  %539 = vmatprep.subr.mxu0 0.0
  %540 = vmatpush1.msra.mxu0 0.0
  %541 = vmatprep.subr.mxu0 0.0
  %542 = vmatpush1.msra.mxu0 0.0
  %543 = vmatprep.subr.mxu0 0.0
  %544 = vmatpush1.msra.mxu0 0.0
  %545 = vmatprep.subr.mxu0 0.0
  %546 = vmatpush1.msra.mxu0 0.0
  %547 = vmatprep.subr.mxu0 0.0
  %548 = vmatpush1.msra.mxu0 0.0
  %549 = vmatprep.subr.mxu0 0.0
  %550 = vmatpush1.msra.mxu0 0.0
  %551 = vmatprep.subr.mxu0 0.0
  %552 = vmatpush1.msra.mxu0 0.0
  %553 = vmatprep.subr.mxu0 0.0
  %554 = vmatpush1.msra.mxu0 0.0
  %555 = vmatprep.subr.mxu0 0.0
  %556 = vmatpush1.msra.mxu0 0.0
  %557 = vmatprep.subr.mxu0 0.0
  %558 = vmatpush1.msra.mxu0 0.0
  %559 = vmatprep.subr.mxu0 0.0
  %560 = vmatpush1.msra.mxu0 0.0
  %561 = vmatprep.subr.mxu0 0.0
  %562 = vmatpush1.msra.mxu0 0.0
  %563 = vmatprep.subr.mxu0 0.0
  %564 = vmatpush1.msra.mxu0 0.0
  %565 = vmatprep.subr.mxu0 0.0
  %566 = vmatpush1.msra.mxu0 0.0
  %567 = vmatprep.subr.mxu0 0.0
  %568 = vmatpush1.msra.mxu0 0.0
  %569 = vmatprep.subr.mxu0 0.0
  %570 = vmatpush1.msra.mxu0 0.0
  %571 = vmatprep.subr.mxu0 0.0
  %572 = vmatpush1.msra.mxu0 0.0
  %573 = vmatprep.subr.mxu0 0.0
  %574 = vmatpush1.msra.mxu0 0.0
  %575 = vmatprep.subr.mxu0 0.0
  %576 = vmatpush1.msra.mxu0 0.0
  %577 = vmatprep.subr.mxu0 0.0
  %578 = vmatpush1.msra.mxu0 0.0
  %579 = vmatprep.subr.mxu0 0.0
  %580 = vmatpush1.msra.mxu0 0.0
  %581 = vmatprep.subr.mxu0 0.0
  %582 = vmatpush1.msra.mxu0 0.0
  %583 = vmatprep.subr.mxu0 0.0
  %584 = vmatpush1.msra.mxu0 0.0
  %585 = vmatprep.subr.mxu0 0.0
  %586 = vmatpush1.msra.mxu0 0.0
  %587 = vmatprep.subr.mxu0 0.0
  %588 = vmatpush1.msra.mxu0 0.0
  %589 = vmatprep.subr.mxu0 0.0
  %590 = vmatpush1.msra.mxu0 0.0
  %591 = vmatprep.mubr.f32.mxu0 0.0
  %592 = vmatmul.mubr.f32.gmra.mrb[0].mxu0 %v522
  %v593 = vpop.f32.mrb[0].mxu0
  %v594 = vadd.f32 %v513, %v593
  %v595 = vpop.f32.mrb[0].mxu0
  %v596 = vadd.f32 %v513, %v595
  %597 = vmatprep.mubr.f32.mxu0 0.0
  %598 = vmatmul.mubr.f32.gmra.mrb[0].mxu0 %v525
  %v599 = vpop.f32.mrb[0].mxu0
  %v600 = vadd.f32 %v518, %v599
  %v601 = vpop.f32.mrb[0].mxu0
  %v602 = vadd.f32 %v518, %v601
  %603 = vdwg.mxu0
  %v604 = vld [vmem:[%s1 + $0x38] sm:$0xff]
  %v605 = vld [vmem:[%s1 + $0x40] sm:$0xff]
  %v606 = vld [vmem:[%s2 + $0x38] sm:$0xff]
  %v607 = vld [vmem:[%s2 + $0x40] sm:$0xff]
  %609 = vset.pattern.permute.xlu0 0
  %610 = vperm.xlu0 %609, %v606
  %v611 = vpop.permute.xlu0 %610
  %614 = vset.pattern.permute.xlu0 0
  %615 = vperm.xlu0 %614, %v607
  %v616 = vpop.permute.xlu0 %615
  %vm618 = vcmask 64512
  %v620 = vsel %vm618, %v604, 0
  %v623 = vsel %vm618, %v605, 0
  %625 = vmatprep.subr.mxu0 %v356
  %626 = vmatpush1.msra.mxu0 %v355
  %627 = vmatprep.subr.mxu0 0.0
  %628 = vmatpush1.msra.mxu0 0.0
  %629 = vmatprep.subr.mxu0 0.0
  %630 = vmatpush1.msra.mxu0 0.0
  %631 = vmatprep.subr.mxu0 0.0
  %632 = vmatpush1.msra.mxu0 0.0
  %633 = vmatprep.subr.mxu0 0.0
  %634 = vmatpush1.msra.mxu0 0.0
  %635 = vmatprep.subr.mxu0 0.0
  %636 = vmatpush1.msra.mxu0 0.0
  %637 = vmatprep.subr.mxu0 0.0
  %638 = vmatpush1.msra.mxu0 0.0
  %639 = vmatprep.subr.mxu0 0.0
  %640 = vmatpush1.msra.mxu0 0.0
  %641 = vmatprep.subr.mxu0 0.0
  %642 = vmatpush1.msra.mxu0 0.0
  %643 = vmatprep.subr.mxu0 0.0
  %644 = vmatpush1.msra.mxu0 0.0
  %645 = vmatprep.subr.mxu0 0.0
  %646 = vmatpush1.msra.mxu0 0.0
  %647 = vmatprep.subr.mxu0 0.0
  %648 = vmatpush1.msra.mxu0 0.0
  %649 = vmatprep.subr.mxu0 0.0
  %650 = vmatpush1.msra.mxu0 0.0
  %651 = vmatprep.subr.mxu0 0.0
  %652 = vmatpush1.msra.mxu0 0.0
  %653 = vmatprep.subr.mxu0 0.0
  %654 = vmatpush1.msra.mxu0 0.0
  %655 = vmatprep.subr.mxu0 0.0
  %656 = vmatpush1.msra.mxu0 0.0
  %657 = vmatprep.subr.mxu0 0.0
  %658 = vmatpush1.msra.mxu0 0.0
  %659 = vmatprep.subr.mxu0 0.0
  %660 = vmatpush1.msra.mxu0 0.0
  %661 = vmatprep.subr.mxu0 0.0
  %662 = vmatpush1.msra.mxu0 0.0
  %663 = vmatprep.subr.mxu0 0.0
  %664 = vmatpush1.msra.mxu0 0.0
  %665 = vmatprep.subr.mxu0 0.0
  %666 = vmatpush1.msra.mxu0 0.0
  %667 = vmatprep.subr.mxu0 0.0
  %668 = vmatpush1.msra.mxu0 0.0
  %669 = vmatprep.subr.mxu0 0.0
  %670 = vmatpush1.msra.mxu0 0.0
  %671 = vmatprep.subr.mxu0 0.0
  %672 = vmatpush1.msra.mxu0 0.0
  %673 = vmatprep.subr.mxu0 0.0
  %674 = vmatpush1.msra.mxu0 0.0
  %675 = vmatprep.subr.mxu0 0.0
  %676 = vmatpush1.msra.mxu0 0.0
  %677 = vmatprep.subr.mxu0 0.0
  %678 = vmatpush1.msra.mxu0 0.0
  %679 = vmatprep.subr.mxu0 0.0
  %680 = vmatpush1.msra.mxu0 0.0
  %681 = vmatprep.subr.mxu0 0.0
  %682 = vmatpush1.msra.mxu0 0.0
  %683 = vmatprep.subr.mxu0 0.0
  %684 = vmatpush1.msra.mxu0 0.0
  %685 = vmatprep.subr.mxu0 0.0
  %686 = vmatpush1.msra.mxu0 0.0
  %687 = vmatprep.subr.mxu0 0.0
  %688 = vmatpush1.msra.mxu0 0.0
  %689 = vmatprep.mubr.f32.mxu0 0.0
  %690 = vmatmul.mubr.f32.gmra.mrb[0].mxu0 %v620
  %v691 = vpop.f32.mrb[0].mxu0
  %v692 = vadd.f32 %v611, %v691
  %v693 = vpop.f32.mrb[0].mxu0
  %v694 = vadd.f32 %v611, %v693
  %695 = vmatprep.mubr.f32.mxu0 0.0
  %696 = vmatmul.mubr.f32.gmra.mrb[0].mxu0 %v623
  %v697 = vpop.f32.mrb[0].mxu0
  %v698 = vadd.f32 %v616, %v697
  %v699 = vpop.f32.mrb[0].mxu0
  %v700 = vadd.f32 %v616, %v699
  %701 = vdwg.mxu0
  %v702 = vadd.f32 %v594, %v692
  %v703 = vadd.f32 %v596, %v694
  %v704 = vadd.f32 %v600, %v698
  %v705 = vadd.f32 %v602, %v700
  %v706 = vmax.f32 %v702, 0.0
  %v707 = vmax.f32 %v703, 0.0
  %v708 = vmax.f32 %v704, 0.0
  %v709 = vmax.f32 %v705, 0.0
  %v710 = vld [vmem:[%s1 + $0x48] sm:$0xff]
  %vm711 = vcmask 130048
  %v713 = vsel %vm711, %v710, 0
  %715 = vmatprep.subr.mxu0 %v707
  %716 = vmatpush1.msra.mxu0 %v706
  %717 = vmatprep.subr.mxu0 %v709
  %718 = vmatpush1.msra.mxu0 %v708
  %719 = vmatprep.subr.mxu0 0.0
  %720 = vmatpush1.msra.mxu0 0.0
  %721 = vmatprep.subr.mxu0 0.0
  %722 = vmatpush1.msra.mxu0 0.0
  %723 = vmatprep.subr.mxu0 0.0
  %724 = vmatpush1.msra.mxu0 0.0
  %725 = vmatprep.subr.mxu0 0.0
  %726 = vmatpush1.msra.mxu0 0.0
  %727 = vmatprep.subr.mxu0 0.0
  %728 = vmatpush1.msra.mxu0 0.0
  %729 = vmatprep.subr.mxu0 0.0
  %730 = vmatpush1.msra.mxu0 0.0
  %731 = vmatprep.subr.mxu0 0.0
  %732 = vmatpush1.msra.mxu0 0.0
  %733 = vmatprep.subr.mxu0 0.0
  %734 = vmatpush1.msra.mxu0 0.0
  %735 = vmatprep.subr.mxu0 0.0
  %736 = vmatpush1.msra.mxu0 0.0
  %737 = vmatprep.subr.mxu0 0.0
  %738 = vmatpush1.msra.mxu0 0.0
  %739 = vmatprep.subr.mxu0 0.0
  %740 = vmatpush1.msra.mxu0 0.0
  %741 = vmatprep.subr.mxu0 0.0
  %742 = vmatpush1.msra.mxu0 0.0
  %743 = vmatprep.subr.mxu0 0.0
  %744 = vmatpush1.msra.mxu0 0.0
  %745 = vmatprep.subr.mxu0 0.0
  %746 = vmatpush1.msra.mxu0 0.0
  %747 = vmatprep.subr.mxu0 0.0
  %748 = vmatpush1.msra.mxu0 0.0
  %749 = vmatprep.subr.mxu0 0.0
  %750 = vmatpush1.msra.mxu0 0.0
  %751 = vmatprep.subr.mxu0 0.0
  %752 = vmatpush1.msra.mxu0 0.0
  %753 = vmatprep.subr.mxu0 0.0
  %754 = vmatpush1.msra.mxu0 0.0
  %755 = vmatprep.subr.mxu0 0.0
  %756 = vmatpush1.msra.mxu0 0.0
  %757 = vmatprep.subr.mxu0 0.0
  %758 = vmatpush1.msra.mxu0 0.0
  %759 = vmatprep.subr.mxu0 0.0
  %760 = vmatpush1.msra.mxu0 0.0
  %761 = vmatprep.subr.mxu0 0.0
  %762 = vmatpush1.msra.mxu0 0.0
  %763 = vmatprep.subr.mxu0 0.0
  %764 = vmatpush1.msra.mxu0 0.0
  %765 = vmatprep.subr.mxu0 0.0
  %766 = vmatpush1.msra.mxu0 0.0
  %767 = vmatprep.subr.mxu0 0.0
  %768 = vmatpush1.msra.mxu0 0.0
  %769 = vmatprep.subr.mxu0 0.0
  %770 = vmatpush1.msra.mxu0 0.0
  %771 = vmatprep.subr.mxu0 0.0
  %772 = vmatpush1.msra.mxu0 0.0
  %773 = vmatprep.subr.mxu0 0.0
  %774 = vmatpush1.msra.mxu0 0.0
  %775 = vmatprep.subr.mxu0 0.0
  %776 = vmatpush1.msra.mxu0 0.0
  %777 = vmatprep.subr.mxu0 0.0
  %778 = vmatpush1.msra.mxu0 0.0
  %779 = vmatprep.mubr.f32.mxu0 0.0
  %780 = vmatmul.mubr.f32.gmra.mrb[0].mxu0 %v713
  %v781 = vpop.f32.mrb[0].mxu0
  %v782 = vadd.f32 0.0, %v781
  %v783 = vpop.f32.mrb[0].mxu0
  %v784 = vadd.f32 0.0, %v783
  %785 = vdwg.mxu0
  %786 = vst [vmem:[%s3] sm:$0xff] %v782
  %787 = vst [vmem:[%s3 + $0x8] sm:$0xff] %v784
  // Predicated region
  $region14: #{resnet1d_forward.1} parent=0 // pred_check
    _
  $region15: #{resnet1d_forward.1} parent=0 // pred_check_branch
    %789 = sbr.rel (0) target = $region17
  $region16: #{resnet1d_forward.1} parent=0 // pred_region
    _
  $region17: #{resnet1d_forward.1} parent=0 // pred_fallthru
    _
  // Predicated region
  $region18: #{resnet1d_forward.1} parent=0 // pred_check
    _
  $region19: #{resnet1d_forward.1} parent=0 // pred_check_branch
    %791 = sbr.rel (0) target = $region21
  $region20: #{resnet1d_forward.1} parent=0 // pred_region
    _
  $region21: #{resnet1d_forward.1} parent=0 // pred_fallthru
    _

</llo_original>
